<compile_context>
chip_gen: v5e
topology: v5e:2x2
jax: 0.10.0
libtpu: 0.0.40
codegen_flags: <defaults>
</compile_context>

<pallas_src>
import functools
import math

import jax
import jax.numpy as jnp
from jax.experimental import pallas as pl
from jax.experimental.pallas import tpu as pltpu


_TARGET_BLOCK_BYTES = 1 << 20   # ~1 MiB x-blocks: amortize step overhead, ~85%+ of HBM roofline
_MAX_SAMPLE_BYTES = 4 << 20     # per-sample x above this -> two-phase HW-tiled kernel
_MAX_BN = 8                     # cap the static unroll over samples per block


def _largest_divisor_leq(n, cap):
    cap = max(1, min(n, cap))
    for d in range(cap, 0, -1):
        if n % d == 0:
            return d
    return 1


# ----------------------------------------------------------------------------
# Path A: fused single-pass kernel, Bn samples per grid step (whole HW resident)
# ----------------------------------------------------------------------------
def _ca_fused_kernel(x_ref, w1_ref, w2_ref, gated_ref, out_ref, *, inv_hw, bn):
    # x_ref: (Bn, C, HW) in the input dtype; w1: (Cmid, C); w2: (C, Cmid).
    w1 = w1_ref[...].astype(jnp.float32)
    w2 = w2_ref[...].astype(jnp.float32)
    for b in range(bn):                                   # static unroll over samples
        x = x_ref[b].astype(jnp.float32)                  # (C, HW) -- x read from HBM once
        avg = jnp.sum(x, axis=-1, keepdims=True) * jnp.float32(inv_hw)   # (C, 1)
        mx = jnp.max(x, axis=-1, keepdims=True)                          # (C, 1)
        pooled = jnp.concatenate([avg, mx], axis=-1)                     # (C, 2)
        h = jnp.maximum(
            jnp.dot(w1, pooled, preferred_element_type=jnp.float32), 0.0)  # (Cmid, 2)
        z = jnp.dot(w2, h, preferred_element_type=jnp.float32)             # (C, 2)
        out = z[:, 0:1] + z[:, 1:2]                                         # (C, 1)
        out_ref[b] = out.astype(out_ref.dtype)
        gated_ref[b] = (x * jax.nn.sigmoid(out)).astype(gated_ref.dtype)   # lane-dense store


# ----------------------------------------------------------------------------
# Path B: two-phase HW-tiled kernel for large per-sample blocks
#   grid = (N, 2, HW//THW):  phase 0 = pool (accumulate f32 sum / max),
#                            phase 1 = MLP (at t==0) + gate over HW tiles.
# ----------------------------------------------------------------------------
def _ca_tiled_kernel(x_ref, w1_ref, w2_ref, gated_ref, out_ref,
                     sum_acc, max_acc, gate_acc, *, inv_hw):
    phase = pl.program_id(1)
    t = pl.program_id(2)

    @pl.when(jnp.logical_and(phase == 0, t == 0))
    def _init():
        sum_acc[...] = jnp.zeros_like(sum_acc)
        max_acc[...] = jnp.full_like(max_acc, -jnp.inf)

    @pl.when(phase == 0)
    def _pool():
        x = x_ref[...].astype(jnp.float32)                       # (1, C, THW)
        sum_acc[...] += jnp.sum(x, axis=-1, keepdims=True)       # f32 accumulation
        max_acc[...] = jnp.maximum(max_acc[...],
                                   jnp.max(x, axis=-1, keepdims=True))

    @pl.when(jnp.logical_and(phase == 1, t == 0))
    def _mlp():
        w1 = w1_ref[...].astype(jnp.float32)
        w2 = w2_ref[...].astype(jnp.float32)
        avg = sum_acc[0] * jnp.float32(inv_hw)                   # (C, 1) -- full-HW mean
        pooled = jnp.concatenate([avg, max_acc[0]], axis=-1)     # (C, 2)
        h = jnp.maximum(
            jnp.dot(w1, pooled, preferred_element_type=jnp.float32), 0.0)
        z = jnp.dot(w2, h, preferred_element_type=jnp.float32)   # (C, 2)
        out = z[:, 0:1] + z[:, 1:2]                               # (C, 1)
        out_ref[0] = out.astype(out_ref.dtype)
        gate_acc[0] = jax.nn.sigmoid(out)

    @pl.when(phase == 1)
    def _gate():
        x = x_ref[...].astype(jnp.float32)                        # (1, C, THW)
        gated_ref[...] = (x * gate_acc[...]).astype(gated_ref.dtype)


# ----------------------------------------------------------------------------
# Wrapper
# ----------------------------------------------------------------------------
def channel_attention(x, fc1_w, fc2_w, *, max_sample_bytes=_MAX_SAMPLE_BYTES):
    """Channel attention.

    Args:
      x:     (N, C, H, W) activations, f32 or bf16 (PyTorch NCHW layout).
      fc1_w: (Cmid, C) -- nn.Conv2d(in_planes, out_planes, 1, bias=False).weight[:, :, 0, 0]
      fc2_w: (C, Cmid) -- nn.Conv2d(out_planes, in_planes, 1, bias=False).weight[:, :, 0, 0]

    Returns:
      (sigmoid(out) * x, out): (N, C, H, W) in x.dtype and (N, C, 1, 1) in f32.
    """
    N, C, H, W = x.shape
    Cmid = fc1_w.shape[0]
    assert fc1_w.shape == (Cmid, C), fc1_w.shape
    assert fc2_w.shape == (C, Cmid), fc2_w.shape
    HW = H * W
    inv_hw = 1.0 / float(HW)

    x3 = x.reshape(N, C, HW)                 # metadata-only reshape; keep native dtype
    itemsize = jnp.dtype(x.dtype).itemsize
    per_sample = C * HW * itemsize
    w_bytes = (fc1_w.size + fc2_w.size) * 4
    out_dtype = jnp.float32                  # keep pre-sigmoid logits in f32

    out_shapes = (
        jax.ShapeDtypeStruct((N, C, HW), x.dtype),
        jax.ShapeDtypeStruct((N, C, 1), out_dtype),
    )

    if per_sample <= max_sample_bytes:
        # ---------------- Path A: whole-HW blocks, batch-blocked ----------------
        bn = _largest_divisor_leq(
            N, min(_MAX_BN, max(1, _TARGET_BLOCK_BYTES // per_sample)))
        x_block = bn * per_sample
        vmem_limit = int(min(max(4 * x_block + w_bytes + (8 << 20), 32 << 20), 64 << 20))

        gated, out = pl.pallas_call(
            functools.partial(_ca_fused_kernel, inv_hw=inv_hw, bn=bn),
            out_shape=out_shapes,
            grid_spec=pltpu.PrefetchScalarGridSpec(
                num_scalar_prefetch=0,
                grid=(N // bn,),
                in_specs=[
                    pl.BlockSpec((bn, C, HW), lambda n: (n, 0, 0)),   # x (Bn samples)
                    pl.BlockSpec((Cmid, C), lambda n: (0, 0)),        # fc1 weight (resident)
                    pl.BlockSpec((C, Cmid), lambda n: (0, 0)),        # fc2 weight (resident)
                ],
                out_specs=[
                    pl.BlockSpec((bn, C, HW), lambda n: (n, 0, 0)),   # gated output
                    pl.BlockSpec((bn, C, 1), lambda n: (n, 0, 0)),    # logits
                ],
            ),
            compiler_params=pltpu.CompilerParams(
                dimension_semantics=("parallel",),
                vmem_limit_bytes=vmem_limit),
        )(x3, fc1_w, fc2_w)
    else:
        # ---------------- Path B: two-phase, HW tiled (large H*W) ----------------
        tile_budget = min(_TARGET_BLOCK_BYTES, max_sample_bytes)
        target_thw = max(128, (tile_budget // (C * itemsize)) // 128 * 128)
        thw = None
        max_mult = min(target_thw, (HW // 128) * 128)
        for cand in range(max_mult, 0, -128):
            if HW % cand == 0:
                thw = cand
                break
        if thw is None:
            # TODO(synk): pad/mask HW that has no multiple-of-128 divisor.
            thw = HW
        n_t = HW // thw
        x_block = C * thw * itemsize
        vmem_limit = int(min(max(4 * x_block + w_bytes + (8 << 20), 32 << 20), 64 << 20))

        gated, out = pl.pallas_call(
            functools.partial(_ca_tiled_kernel, inv_hw=inv_hw),
            out_shape=out_shapes,
            grid_spec=pltpu.PrefetchScalarGridSpec(
                num_scalar_prefetch=0,
                grid=(N, 2, n_t),                                     # (sample, phase, HW tile)
                in_specs=[
                    pl.BlockSpec((1, C, thw), lambda n, p, t: (n, 0, t)),
                    pl.BlockSpec((Cmid, C), lambda n, p, t: (0, 0)),
                    pl.BlockSpec((C, Cmid), lambda n, p, t: (0, 0)),
                ],
                out_specs=[
                    # During the pool phase the gated block index is pinned to tile 0,
                    # so the only HBM writeback per tile happens after the gate phase.
                    pl.BlockSpec((1, C, thw), lambda n, p, t: (n, 0, p * t)),
                    pl.BlockSpec((1, C, 1), lambda n, p, t: (n, 0, 0)),
                ],
                scratch_shapes=[
                    pltpu.VMEM((1, C, 1), jnp.float32),   # running sum
                    pltpu.VMEM((1, C, 1), jnp.float32),   # running max
                    pltpu.VMEM((1, C, 1), jnp.float32),   # sigmoid gate
                ],
            ),
            compiler_params=pltpu.CompilerParams(
                dimension_semantics=("parallel", "arbitrary", "arbitrary"),
                vmem_limit_bytes=vmem_limit),
        )(x3, fc1_w, fc2_w)

    return gated.reshape(N, C, H, W), out.reshape(N, C, 1, 1)


# ----------------------------------------------------------------------------
# Pure-JAX reference (mirrors the PyTorch module)
# ----------------------------------------------------------------------------
def channel_attention_ref(x, fc1_w, fc2_w):
    N, C, H, W = x.shape
    avg = jnp.mean(x, axis=(2, 3))                 # (N, C)
    mx = jnp.max(x, axis=(2, 3))                   # (N, C)

    def mlp(v):
        h = jnp.maximum(v @ fc1_w.T, 0.0)
        return h @ fc2_w.T

    out = mlp(avg) + mlp(mx)                       # (N, C)
    gated = jax.nn.sigmoid(out)[:, :, None, None] * x
    return gated, out.reshape(N, C, 1, 1)


# ----------------------------------------------------------------------------
if __name__ == "__main__":
    # in_planes=64, out_planes=16, batch=2, 16x16 spatial (H*W = 256, lane-dense).
    N, C, Cmid, H, W = 2, 64, 16, 16, 16

    key = jax.random.PRNGKey(0)
    kx, k1, k2 = jax.random.split(key, 3)
    x = jax.random.normal(kx, (N, C, H, W), jnp.float32)
    fc1_w = (1.0 / math.sqrt(C)) * jax.random.normal(k1, (Cmid, C), jnp.float32)
    fc2_w = (1.0 / math.sqrt(Cmid)) * jax.random.normal(k2, (C, Cmid), jnp.float32)

    g_ref, o_ref = channel_attention_ref(x, fc1_w, fc2_w)

    # 1) Fused single-pass path (batch-blocked), f32 activations.
    fwd = jax.jit(channel_attention)
    gated, out = jax.block_until_ready(fwd(x, fc1_w, fc2_w))
    assert gated.shape == (N, C, H, W) and out.shape == (N, C, 1, 1)
    assert bool(jnp.all(jnp.isfinite(gated))) and bool(jnp.all(jnp.isfinite(out)))
    assert bool(jnp.allclose(gated, g_ref, rtol=1e-4, atol=1e-4))
    assert bool(jnp.allclose(out, o_ref, rtol=1e-4, atol=1e-4))

    # 2) Two-phase HW-tiled path (forced by shrinking the per-sample budget).
    fwd_tiled = jax.jit(functools.partial(channel_attention, max_sample_bytes=32 * 1024))
    gated_t, out_t = jax.block_until_ready(fwd_tiled(x, fc1_w, fc2_w))
    assert bool(jnp.allclose(gated_t, g_ref, rtol=1e-4, atol=1e-4))
    assert bool(jnp.allclose(out_t, o_ref, rtol=1e-4, atol=1e-4))

    # 3) bf16 activations in / bf16 gated out (logits stay f32): halves HBM bytes.
    xb = x.astype(jnp.bfloat16)
    gated_b, out_b = jax.block_until_ready(fwd(xb, fc1_w, fc2_w))
    assert gated_b.dtype == jnp.bfloat16 and out_b.dtype == jnp.float32
    assert bool(jnp.allclose(gated_b.astype(jnp.float32), g_ref, rtol=1e-1, atol=1e-1))
    assert bool(jnp.allclose(out_b, o_ref, rtol=1e-1, atol=1e-1))

    print("KERNEL_OK")
</pallas_src>

<mosaic_0001>
module attributes {stable_mosaic.version = 11 : i64} {
  func.func @_ca_fused_kernel(%arg0: i32, %arg1: memref<2x64x256xf32, #tpu.memory_space<vmem>>, %arg2: memref<16x64xf32, #tpu.memory_space<vmem>>, %arg3: memref<64x16xf32, #tpu.memory_space<vmem>>, %arg4: memref<2x64x256xf32, #tpu.memory_space<vmem>>, %arg5: memref<2x64x1xf32, #tpu.memory_space<vmem>>) attributes {dimension_semantics = [#tpu.dimension_semantics<parallel>], iteration_bounds = array<i64: 1>, scalar_prefetch = 0 : i64, scratch_operands = 0 : i64, tpu.core_type = #tpu.core_type<tc>, window_params = [{transform_indices = @transform_0, window_bounds = array<i64: 2, 64, 256>}, {pipeline_mode = #tpu.pipeline_mode<synchronous>, transform_indices = @transform_1, window_bounds = array<i64: 16, 64>}, {pipeline_mode = #tpu.pipeline_mode<synchronous>, transform_indices = @transform_2, window_bounds = array<i64: 64, 16>}, {transform_indices = @transform_3, window_bounds = array<i64: 2, 64, 256>}, {transform_indices = @transform_4, window_bounds = array<i64: 2, 64, 1>}]} {
    %c0 = arith.constant 0 : index
    %c0_0 = arith.constant 0 : index
    %0 = vector.load %arg2[%c0, %c0_0] : memref<16x64xf32, #tpu.memory_space<vmem>>, vector<16x64xf32>
    %c0_1 = arith.constant 0 : index
    %c0_2 = arith.constant 0 : index
    %1 = vector.load %arg3[%c0_1, %c0_2] : memref<64x16xf32, #tpu.memory_space<vmem>>, vector<64x16xf32>
    %c0_3 = arith.constant 0 : index
    %c0_4 = arith.constant 0 : index
    %c0_5 = arith.constant 0 : index
    %2 = vector.load %arg1[%c0_3, %c0_4, %c0_5] : memref<2x64x256xf32, #tpu.memory_space<vmem>>, vector<1x64x256xf32>
    %3 = vector.shape_cast %2 : vector<1x64x256xf32> to vector<64x256xf32>
    %cst = arith.constant dense<0.000000e+00> : vector<64xf32>
    %4 = vector.multi_reduction <add>, %3, %cst [1] : vector<64x256xf32> to vector<64xf32>
    %5 = vector.shape_cast %4 : vector<64xf32> to vector<64x1xf32>
    %cst_6 = arith.constant 3.906250e-03 : f32
    %6 = vector.broadcast %cst_6 : f32 to vector<64x1xf32>
    %7 = arith.mulf %5, %6 : vector<64x1xf32>
    %cst_7 = arith.constant dense<0xFF800000> : vector<64xf32>
    %8 = vector.multi_reduction <maximumf>, %3, %cst_7 [1] : vector<64x256xf32> to vector<64xf32>
    %9 = vector.shape_cast %8 : vector<64xf32> to vector<64x1xf32>
    %10 = tpu.concatenate %7, %9 in 1 : vector<64x1xf32>, vector<64x1xf32> -> vector<64x2xf32>
    %cst_8 = arith.constant dense<0.000000e+00> : vector<16x2xf32>
    %11 = tpu.matmul %0, %10, %cst_8 {dimension_numbers = #tpu.dot_dimension_numbers<[1], [0], [0], [1], [0, 0, 1, 1], [], []>} : vector<16x64xf32>, vector<64x2xf32>, vector<16x2xf32> -> vector<16x2xf32>
    %cst_9 = arith.constant 0.000000e+00 : f32
    %12 = vector.broadcast %cst_9 : f32 to vector<16x2xf32>
    %13 = arith.maximumf %11, %12 : vector<16x2xf32>
    %cst_10 = arith.constant dense<0.000000e+00> : vector<64x2xf32>
    %14 = tpu.matmul %1, %13, %cst_10 {dimension_numbers = #tpu.dot_dimension_numbers<[1], [0], [0], [1], [0, 0, 1, 1], [], []>} : vector<64x16xf32>, vector<16x2xf32>, vector<64x2xf32> -> vector<64x2xf32>
    %15 = vector.extract_strided_slice %14 {offsets = [0, 0], sizes = [64, 1], strides = [1, 1]} : vector<64x2xf32> to vector<64x1xf32>
    %16 = vector.extract_strided_slice %14 {offsets = [0, 1], sizes = [64, 1], strides = [1, 1]} : vector<64x2xf32> to vector<64x1xf32>
    %17 = arith.addf %15, %16 : vector<64x1xf32>
    %c0_11 = arith.constant 0 : index
    %c0_12 = arith.constant 0 : index
    %c0_13 = arith.constant 0 : index
    %18 = vector.load %arg5[%c0_11, %c0_12, %c0_13] : memref<2x64x1xf32, #tpu.memory_space<vmem>>, vector<1x64x1xf32>
    %19 = vector.shape_cast %18 : vector<1x64x1xf32> to vector<64x1xf32>
    %20 = vector.shape_cast %17 : vector<64x1xf32> to vector<1x64x1xf32>
    tpu.vector_store %arg5[%c0_11, %c0_12, %c0_13], %20 {strides = array<i32>} : memref<2x64x1xf32, #tpu.memory_space<vmem>>, vector<1x64x1xf32>,
    %21 = arith.negf %17 : vector<64x1xf32>
    %22 = math.exp %21 : vector<64x1xf32>
    %cst_14 = arith.constant 1.000000e+00 : f32
    %23 = vector.broadcast %cst_14 : f32 to vector<64x1xf32>
    %24 = arith.addf %23, %22 : vector<64x1xf32>
    %25 = arith.divf %23, %24 : vector<64x1xf32>
    %26 = vector.broadcast %25 : vector<64x1xf32> to vector<64x256xf32>
    %27 = arith.mulf %3, %26 : vector<64x256xf32>
    %c0_15 = arith.constant 0 : index
    %c0_16 = arith.constant 0 : index
    %c0_17 = arith.constant 0 : index
    %28 = vector.load %arg4[%c0_15, %c0_16, %c0_17] : memref<2x64x256xf32, #tpu.memory_space<vmem>>, vector<1x64x256xf32>
    %29 = vector.shape_cast %28 : vector<1x64x256xf32> to vector<64x256xf32>
    %30 = vector.shape_cast %27 : vector<64x256xf32> to vector<1x64x256xf32>
    tpu.vector_store %arg4[%c0_15, %c0_16, %c0_17], %30 {strides = array<i32>} : memref<2x64x256xf32, #tpu.memory_space<vmem>>, vector<1x64x256xf32>,
    %c1 = arith.constant 1 : index
    %c0_18 = arith.constant 0 : index
    %c0_19 = arith.constant 0 : index
    %31 = vector.load %arg1[%c1, %c0_18, %c0_19] : memref<2x64x256xf32, #tpu.memory_space<vmem>>, vector<1x64x256xf32>
    %32 = vector.shape_cast %31 : vector<1x64x256xf32> to vector<64x256xf32>
    %cst_20 = arith.constant dense<0.000000e+00> : vector<64xf32>
    %33 = vector.multi_reduction <add>, %32, %cst_20 [1] : vector<64x256xf32> to vector<64xf32>
    %34 = vector.shape_cast %33 : vector<64xf32> to vector<64x1xf32>
    %cst_21 = arith.constant 3.906250e-03 : f32
    %35 = vector.broadcast %cst_21 : f32 to vector<64x1xf32>
    %36 = arith.mulf %34, %35 : vector<64x1xf32>
    %cst_22 = arith.constant dense<0xFF800000> : vector<64xf32>
    %37 = vector.multi_reduction <maximumf>, %32, %cst_22 [1] : vector<64x256xf32> to vector<64xf32>
    %38 = vector.shape_cast %37 : vector<64xf32> to vector<64x1xf32>
    %39 = tpu.concatenate %36, %38 in 1 : vector<64x1xf32>, vector<64x1xf32> -> vector<64x2xf32>
    %cst_23 = arith.constant dense<0.000000e+00> : vector<16x2xf32>
    %40 = tpu.matmul %0, %39, %cst_23 {dimension_numbers = #tpu.dot_dimension_numbers<[1], [0], [0], [1], [0, 0, 1, 1], [], []>} : vector<16x64xf32>, vector<64x2xf32>, vector<16x2xf32> -> vector<16x2xf32>
    %cst_24 = arith.constant 0.000000e+00 : f32
    %41 = vector.broadcast %cst_24 : f32 to vector<16x2xf32>
    %42 = arith.maximumf %40, %41 : vector<16x2xf32>
    %cst_25 = arith.constant dense<0.000000e+00> : vector<64x2xf32>
    %43 = tpu.matmul %1, %42, %cst_25 {dimension_numbers = #tpu.dot_dimension_numbers<[1], [0], [0], [1], [0, 0, 1, 1], [], []>} : vector<64x16xf32>, vector<16x2xf32>, vector<64x2xf32> -> vector<64x2xf32>
    %44 = vector.extract_strided_slice %43 {offsets = [0, 0], sizes = [64, 1], strides = [1, 1]} : vector<64x2xf32> to vector<64x1xf32>
    %45 = vector.extract_strided_slice %43 {offsets = [0, 1], sizes = [64, 1], strides = [1, 1]} : vector<64x2xf32> to vector<64x1xf32>
    %46 = arith.addf %44, %45 : vector<64x1xf32>
    %c1_26 = arith.constant 1 : index
    %c0_27 = arith.constant 0 : index
    %c0_28 = arith.constant 0 : index
    %47 = vector.load %arg5[%c1_26, %c0_27, %c0_28] : memref<2x64x1xf32, #tpu.memory_space<vmem>>, vector<1x64x1xf32>
    %48 = vector.shape_cast %47 : vector<1x64x1xf32> to vector<64x1xf32>
    %49 = vector.shape_cast %46 : vector<64x1xf32> to vector<1x64x1xf32>
    tpu.vector_store %arg5[%c1_26, %c0_27, %c0_28], %49 {strides = array<i32>} : memref<2x64x1xf32, #tpu.memory_space<vmem>>, vector<1x64x1xf32>,
    %50 = arith.negf %46 : vector<64x1xf32>
    %51 = math.exp %50 : vector<64x1xf32>
    %cst_29 = arith.constant 1.000000e+00 : f32
    %52 = vector.broadcast %cst_29 : f32 to vector<64x1xf32>
    %53 = arith.addf %52, %51 : vector<64x1xf32>
    %54 = arith.divf %52, %53 : vector<64x1xf32>
    %55 = vector.broadcast %54 : vector<64x1xf32> to vector<64x256xf32>
    %56 = arith.mulf %32, %55 : vector<64x256xf32>
    %c1_30 = arith.constant 1 : index
    %c0_31 = arith.constant 0 : index
    %c0_32 = arith.constant 0 : index
    %57 = vector.load %arg4[%c1_30, %c0_31, %c0_32] : memref<2x64x256xf32, #tpu.memory_space<vmem>>, vector<1x64x256xf32>
    %58 = vector.shape_cast %57 : vector<1x64x256xf32> to vector<64x256xf32>
    %59 = vector.shape_cast %56 : vector<64x256xf32> to vector<1x64x256xf32>
    tpu.vector_store %arg4[%c1_30, %c0_31, %c0_32], %59 {strides = array<i32>} : memref<2x64x256xf32, #tpu.memory_space<vmem>>, vector<1x64x256xf32>,
    return
  }
  func.func @transform_0(%arg0: i32) -> (i32, i32, i32) {
    %c0_i32 = arith.constant 0 : i32
    %c0_i32_0 = arith.constant 0 : i32
    %c0_i32_1 = arith.constant 0 : i32
    return %arg0, %c0_i32, %c0_i32_0 : i32, i32, i32
  }
  func.func @transform_1(%arg0: i32) -> (i32, i32) {
    %c0_i32 = arith.constant 0 : i32
    %c0_i32_0 = arith.constant 0 : i32
    %c0_i32_1 = arith.constant 0 : i32
    return %c0_i32, %c0_i32_0 : i32, i32
  }
  func.func @transform_2(%arg0: i32) -> (i32, i32) {
    %c0_i32 = arith.constant 0 : i32
    %c0_i32_0 = arith.constant 0 : i32
    %c0_i32_1 = arith.constant 0 : i32
    return %c0_i32, %c0_i32_0 : i32, i32
  }
  func.func @transform_3(%arg0: i32) -> (i32, i32, i32) {
    %c0_i32 = arith.constant 0 : i32
    %c0_i32_0 = arith.constant 0 : i32
    %c0_i32_1 = arith.constant 0 : i32
    return %arg0, %c0_i32, %c0_i32_0 : i32, i32, i32
  }
  func.func @transform_4(%arg0: i32) -> (i32, i32, i32) {
    %c0_i32 = arith.constant 0 : i32
    %c0_i32_0 = arith.constant 0 : i32
    %c0_i32_1 = arith.constant 0 : i32
    return %arg0, %c0_i32, %c0_i32_0 : i32, i32, i32
  }
}

</mosaic_0001>

<llo_original>
// kernel: channel_attention.1
$region0: #{channel_attention.1}
  #allocation0 [shape = 'u32[]', space=smem, size = 0x4, offset = 0x4, fixed_abs, tag = 'smem constant byte address 0x4 - core index']
  #allocation1 [shape = 'u32[72,128]{1,0:T(1,128)}', space=vmem, size = 0x9000, scoped, tag = 'internal scratch']
  %s0 = inlined_call_operand.vmem [shape: f32[2,64,256], index: 0, kind: input, shape index: {}]
  %s1 = inlined_call_operand.vmem [shape: f32[16,64], index: 1, kind: input, shape index: {}]
  %s2 = inlined_call_operand.vmem [shape: f32[64,16], index: 2, kind: input, shape index: {}]
  %s3 = inlined_call_operand.vmem [shape: f32[2,64,256], index: 3, kind: output, shape index: {0}]
  %s4 = inlined_call_operand.vmem [shape: f32[2,64,1], index: 4, kind: output, shape index: {1}]
  %5 = xla_tuple %s3, %s4
  %s6 = sld [smem:[#allocation0]]
  $region30: #{channel_attention.1} parent=0
    _
  %s8 = ssub.s32 1, %s6
  %s9 = scalar_select 0, %s8, %s6
  // Predicated region
  $region2: #{channel_attention.1} parent=0 // pred_check
    _
  $region3: #{channel_attention.1} parent=0 // pred_check_branch
    %11 = sbr.rel (0) target = $region5
  $region4: #{channel_attention.1} parent=0 // pred_region
    _
  $region5: #{channel_attention.1} parent=0 // pred_fallthru
    _
  // Predicated region
  $region6: #{channel_attention.1} parent=0 // pred_check
    _
  $region7: #{channel_attention.1} parent=0 // pred_check_branch
    %13 = sbr.rel (0) target = $region9
  $region8: #{channel_attention.1} parent=0 // pred_region
    _
  $region9: #{channel_attention.1} parent=0 // pred_fallthru
    _
  // Predicated region
  $region10: #{channel_attention.1} parent=0 // pred_check
    _
  $region11: #{channel_attention.1} parent=0 // pred_check_branch
    %15 = sbr.rel (0) target = $region13
  $region12: #{channel_attention.1} parent=0 // pred_region
    _
  $region13: #{channel_attention.1} parent=0 // pred_fallthru
    _
  %v16 = vld [vmem:[%s1] sm:$0xff]
  %v17 = vld [vmem:[%s1 + $0x8] sm:$0xff]
  %v18 = vld [vmem:[%s2] sm:$0xff]
  %v19 = vld [vmem:[%s2 + $0x8] sm:$0xff]
  %v20 = vld [vmem:[%s2 + $0x10] sm:$0xff]
  %v21 = vld [vmem:[%s2 + $0x18] sm:$0xff]
  %v22 = vld [vmem:[%s2 + $0x20] sm:$0xff]
  %v23 = vld [vmem:[%s2 + $0x28] sm:$0xff]
  %v24 = vld [vmem:[%s2 + $0x30] sm:$0xff]
  %v25 = vld [vmem:[%s2 + $0x38] sm:$0xff]
  %v26 = vld [vmem:[%s0] sm:$0xff]
  %v27 = vld [vmem:[%s0 + $0x8] sm:$0xff]
  %v28 = vld [vmem:[%s0 + $0x10] sm:$0xff]
  %v29 = vld [vmem:[%s0 + $0x18] sm:$0xff]
  %v30 = vld [vmem:[%s0 + $0x20] sm:$0xff]
  %v31 = vld [vmem:[%s0 + $0x28] sm:$0xff]
  %v32 = vld [vmem:[%s0 + $0x30] sm:$0xff]
  %v33 = vld [vmem:[%s0 + $0x38] sm:$0xff]
  %v34 = vld [vmem:[%s0 + $0x40] sm:$0xff]
  %v35 = vld [vmem:[%s0 + $0x48] sm:$0xff]
  %v36 = vld [vmem:[%s0 + $0x50] sm:$0xff]
  %v37 = vld [vmem:[%s0 + $0x58] sm:$0xff]
  %v38 = vld [vmem:[%s0 + $0x60] sm:$0xff]
  %v39 = vld [vmem:[%s0 + $0x68] sm:$0xff]
  %v40 = vld [vmem:[%s0 + $0x70] sm:$0xff]
  %v41 = vld [vmem:[%s0 + $0x78] sm:$0xff]
  %v42 = vadd.f32 %v26, %v27
  %43 = vadd.xlane.f32.xlu0 %v42
  %v44 = vpop.xlane.xlu0 %43
  %v45 = vadd.f32 %v28, %v29
  %46 = vadd.xlane.f32.xlu0 %v45
  %v47 = vpop.xlane.xlu0 %46
  %v48 = vadd.f32 %v30, %v31
  %49 = vadd.xlane.f32.xlu0 %v48
  %v50 = vpop.xlane.xlu0 %49
  %v51 = vadd.f32 %v32, %v33
  %52 = vadd.xlane.f32.xlu0 %v51
  %v53 = vpop.xlane.xlu0 %52
  %v54 = vadd.f32 %v34, %v35
  %55 = vadd.xlane.f32.xlu0 %v54
  %v56 = vpop.xlane.xlu0 %55
  %v57 = vadd.f32 %v36, %v37
  %58 = vadd.xlane.f32.xlu0 %v57
  %v59 = vpop.xlane.xlu0 %58
  %v60 = vadd.f32 %v38, %v39
  %61 = vadd.xlane.f32.xlu0 %v60
  %v62 = vpop.xlane.xlu0 %61
  %v63 = vadd.f32 %v40, %v41
  %64 = vadd.xlane.f32.xlu0 %v63
  %v65 = vpop.xlane.xlu0 %64
  %v66 = vmul.f32 %v44, 0.00390625
  %v67 = vmul.f32 %v47, 0.00390625
  %v68 = vmul.f32 %v50, 0.00390625
  %v69 = vmul.f32 %v53, 0.00390625
  %v70 = vmul.f32 %v56, 0.00390625
  %v71 = vmul.f32 %v59, 0.00390625
  %v72 = vmul.f32 %v62, 0.00390625
  %v73 = vmul.f32 %v65, 0.00390625
  %v74 = vmax.f32 %v26, %v27
  %75 = vmax.xlane.f32.xlu0 %v74
  %v76 = vpop.xlane.xlu0 %75
  %v77 = vmax.f32 %v28, %v29
  %78 = vmax.xlane.f32.xlu0 %v77
  %v79 = vpop.xlane.xlu0 %78
  %v80 = vmax.f32 %v30, %v31
  %81 = vmax.xlane.f32.xlu0 %v80
  %v82 = vpop.xlane.xlu0 %81
  %v83 = vmax.f32 %v32, %v33
  %84 = vmax.xlane.f32.xlu0 %v83
  %v85 = vpop.xlane.xlu0 %84
  %v86 = vmax.f32 %v34, %v35
  %87 = vmax.xlane.f32.xlu0 %v86
  %v88 = vpop.xlane.xlu0 %87
  %v89 = vmax.f32 %v36, %v37
  %90 = vmax.xlane.f32.xlu0 %v89
  %v91 = vpop.xlane.xlu0 %90
  %v92 = vmax.f32 %v38, %v39
  %93 = vmax.xlane.f32.xlu0 %v92
  %v94 = vpop.xlane.xlu0 %93
  %v95 = vmax.f32 %v40, %v41
  %96 = vmax.xlane.f32.xlu0 %v95
  %v97 = vpop.xlane.xlu0 %96
  %vm98 = vcmask 7168
  %v99 = vsel %vm98, %v66, %v76
  %v100 = vsel %vm98, %v67, %v79
  %v101 = vsel %vm98, %v68, %v82
  %v102 = vsel %vm98, %v69, %v85
  %v103 = vsel %vm98, %v70, %v88
  %v104 = vsel %vm98, %v71, %v91
  %v105 = vsel %vm98, %v72, %v94
  %v106 = vsel %vm98, %v73, %v97
  %vm107 = vcmask 523264
  %v109 = vsel %vm107, %v16, 0
  %v112 = vsel %vm107, %v17, 0
  %114 = vmatpush.msra.mxu0 0.0
  %115 = vmatpush.msra.mxu0 0.0
  %116 = vmatpush.msra.mxu0 0.0
  %117 = vmatpush.msra.mxu0 0.0
  %118 = vmatpush.msra.mxu0 0.0
  %119 = vmatpush.msra.mxu0 0.0
  %120 = vmatpush.msra.mxu0 0.0
  %121 = vmatpush.msra.mxu0 0.0
  %122 = vmatpush.msra.mxu0 %v106
  %123 = vmatpush.msra.mxu0 %v105
  %124 = vmatpush.msra.mxu0 %v104
  %125 = vmatpush.msra.mxu0 %v103
  %126 = vmatpush.msra.mxu0 %v102
  %127 = vmatpush.msra.mxu0 %v101
  %128 = vmatpush.msra.mxu0 %v100
  %129 = vmatpush.msra.mxu0 %v99
  %130 = vmatmul.f32.gmra.mxu0 %v109
  %v131 = vpop.f32.mrf.mxu0
  %v132 = vadd.f32 0.0, %v131
  %133 = vmatmul.f32.gmra.mxu0 %v112
  %v134 = vpop.f32.mrf.mxu0
  %v135 = vadd.f32 0.0, %v134
  %136 = vdwg.mxu0
  %v137 = vmax.f32 %v132, 0.0
  %v138 = vmax.f32 %v135, 0.0
  %vm139 = vcmask 130048
  %v141 = vsel %vm139, %v18, 0
  %v144 = vsel %vm139, %v19, 0
  %v147 = vsel %vm139, %v20, 0
  %v150 = vsel %vm139, %v21, 0
  %v153 = vsel %vm139, %v22, 0
  %v156 = vsel %vm139, %v23, 0
  %v159 = vsel %vm139, %v24, 0
  %v162 = vsel %vm139, %v25, 0
  %164 = vmatpush.msra.mxu0 0.0
  %165 = vmatpush.msra.mxu0 0.0
  %166 = vmatpush.msra.mxu0 0.0
  %167 = vmatpush.msra.mxu0 0.0
  %168 = vmatpush.msra.mxu0 0.0
  %169 = vmatpush.msra.mxu0 0.0
  %170 = vmatpush.msra.mxu0 0.0
  %171 = vmatpush.msra.mxu0 0.0
  %172 = vmatpush.msra.mxu0 0.0
  %173 = vmatpush.msra.mxu0 0.0
  %174 = vmatpush.msra.mxu0 0.0
  %175 = vmatpush.msra.mxu0 0.0
  %176 = vmatpush.msra.mxu0 0.0
  %177 = vmatpush.msra.mxu0 0.0
  %178 = vmatpush.msra.mxu0 %v138
  %179 = vmatpush.msra.mxu0 %v137
  %180 = vmatmul.f32.gmra.mxu0 %v141
  %v181 = vpop.f32.mrf.mxu0
  %v182 = vadd.f32 0.0, %v181
  %183 = vmatmul.f32.gmra.mxu0 %v144
  %v184 = vpop.f32.mrf.mxu0
  %v185 = vadd.f32 0.0, %v184
  %186 = vmatmul.f32.gmra.mxu0 %v147
  %v187 = vpop.f32.mrf.mxu0
  %v188 = vadd.f32 0.0, %v187
  %189 = vmatmul.f32.gmra.mxu0 %v150
  %v190 = vpop.f32.mrf.mxu0
  %v191 = vadd.f32 0.0, %v190
  %192 = vmatmul.f32.gmra.mxu0 %v153
  %v193 = vpop.f32.mrf.mxu0
  %v194 = vadd.f32 0.0, %v193
  %195 = vmatmul.f32.gmra.mxu0 %v156
  %v196 = vpop.f32.mrf.mxu0
  %v197 = vadd.f32 0.0, %v196
  %198 = vmatmul.f32.gmra.mxu0 %v159
  %v199 = vpop.f32.mrf.mxu0
  %v200 = vadd.f32 0.0, %v199
  %201 = vmatmul.f32.gmra.mxu0 %v162
  %v202 = vpop.f32.mrf.mxu0
  %v203 = vadd.f32 0.0, %v202
  %204 = vdwg.mxu0
  %213 = vrot.lane.b32.xlu0 %v182, 127
  %v214 = vpop.permute.xlu0 %213
  %215 = vrot.lane.b32.xlu0 %v185, 127
  %v216 = vpop.permute.xlu0 %215
  %217 = vrot.lane.b32.xlu0 %v188, 127
  %v218 = vpop.permute.xlu0 %217
  %219 = vrot.lane.b32.xlu0 %v191, 127
  %v220 = vpop.permute.xlu0 %219
  %221 = vrot.lane.b32.xlu0 %v194, 127
  %v222 = vpop.permute.xlu0 %221
  %223 = vrot.lane.b32.xlu0 %v197, 127
  %v224 = vpop.permute.xlu0 %223
  %225 = vrot.lane.b32.xlu0 %v200, 127
  %v226 = vpop.permute.xlu0 %225
  %227 = vrot.lane.b32.xlu0 %v203, 127
  %v228 = vpop.permute.xlu0 %227
  %v237 = vadd.f32 %v182, %v214
  %v238 = vadd.f32 %v185, %v216
  %v239 = vadd.f32 %v188, %v218
  %v240 = vadd.f32 %v191, %v220
  %v241 = vadd.f32 %v194, %v222
  %v242 = vadd.f32 %v197, %v224
  %v243 = vadd.f32 %v200, %v226
  %v244 = vadd.f32 %v203, %v228
  %245 = vst.msk [vmem:[%s4] sm:$0xff] %vm98, %v237
  %246 = vst.msk [vmem:[%s4 + $0x8] sm:$0xff] %vm98, %v238
  %247 = vst.msk [vmem:[%s4 + $0x10] sm:$0xff] %vm98, %v239
  %248 = vst.msk [vmem:[%s4 + $0x18] sm:$0xff] %vm98, %v240
  %249 = vst.msk [vmem:[%s4 + $0x20] sm:$0xff] %vm98, %v241
  %250 = vst.msk [vmem:[%s4 + $0x28] sm:$0xff] %vm98, %v242
  %251 = vst.msk [vmem:[%s4 + $0x30] sm:$0xff] %vm98, %v243
  %252 = vst.msk [vmem:[%s4 + $0x38] sm:$0xff] %vm98, %v244
  %v253 = vxor.u32 %v237, 2147483648
  %v254 = vxor.u32 %v238, 2147483648
  %v255 = vxor.u32 %v239, 2147483648
  %v256 = vxor.u32 %v240, 2147483648
  %v257 = vxor.u32 %v241, 2147483648
  %v258 = vxor.u32 %v242, 2147483648
  %v259 = vxor.u32 %v243, 2147483648
  %v260 = vxor.u32 %v244, 2147483648
  %v261 = vmul.f32 %v253, 1.442695
  %v262 = vpow.pop %v261
  %v263 = vmul.f32 %v254, 1.442695
  %v264 = vpow.pop %v263
  %v265 = vmul.f32 %v255, 1.442695
  %v266 = vpow.pop %v265
  %v267 = vmul.f32 %v256, 1.442695
  %v268 = vpow.pop %v267
  %v269 = vmul.f32 %v257, 1.442695
  %v270 = vpow.pop %v269
  %v271 = vmul.f32 %v258, 1.442695
  %v272 = vpow.pop %v271
  %v273 = vmul.f32 %v259, 1.442695
  %v274 = vpow.pop %v273
  %v275 = vmul.f32 %v260, 1.442695
  %v276 = vpow.pop %v275
  %v277 = vadd.f32 %v262, 1.0
  %v278 = vadd.f32 %v264, 1.0
  %v279 = vadd.f32 %v266, 1.0
  %v280 = vadd.f32 %v268, 1.0
  %v281 = vadd.f32 %v270, 1.0
  %v282 = vadd.f32 %v272, 1.0
  %v283 = vadd.f32 %v274, 1.0
  %v284 = vadd.f32 %v276, 1.0
  %v285 = vrcp.pop %v277
  %v286 = vmul.f32 %v277, %v285
  %v287 = vsub.f32 1.0, %v286
  %v288 = vmul.f32 %v285, %v287
  %v289 = vadd.f32 %v285, %v288
  %vm290 = vweird.f32 %v277
  %vm291 = vweird.f32 %v285
  %vm292 = vmor %vm290, %vm291
  %v293 = vsel %vm292, %v285, %v289
  %v294 = vand.u32 2147483647, %v277
  %vm295 = vcmp.eq.f32.partialorder %v294, 8.507059e+37
  %v296 = vand.u32 %v277, 2147483648
  %v297 = vor.u32 1.1754944e-38, %v296
  %v298 = vsel %vm295, %v297, %v293
  %v299 = vmul.f32 1.0, %v298
  %v300 = vrcp.pop %v278
  %v301 = vmul.f32 %v278, %v300
  %v302 = vsub.f32 1.0, %v301
  %v303 = vmul.f32 %v300, %v302
  %v304 = vadd.f32 %v300, %v303
  %vm305 = vweird.f32 %v278
  %vm306 = vweird.f32 %v300
  %vm307 = vmor %vm305, %vm306
  %v308 = vsel %vm307, %v300, %v304
  %v309 = vand.u32 2147483647, %v278
  %vm310 = vcmp.eq.f32.partialorder %v309, 8.507059e+37
  %v311 = vand.u32 %v278, 2147483648
  %v312 = vor.u32 1.1754944e-38, %v311
  %v313 = vsel %vm310, %v312, %v308
  %v314 = vmul.f32 1.0, %v313
  %v315 = vrcp.pop %v279
  %v316 = vmul.f32 %v279, %v315
  %v317 = vsub.f32 1.0, %v316
  %v318 = vmul.f32 %v315, %v317
  %v319 = vadd.f32 %v315, %v318
  %vm320 = vweird.f32 %v279
  %vm321 = vweird.f32 %v315
  %vm322 = vmor %vm320, %vm321
  %v323 = vsel %vm322, %v315, %v319
  %v324 = vand.u32 2147483647, %v279
  %vm325 = vcmp.eq.f32.partialorder %v324, 8.507059e+37
  %v326 = vand.u32 %v279, 2147483648
  %v327 = vor.u32 1.1754944e-38, %v326
  %v328 = vsel %vm325, %v327, %v323
  %v329 = vmul.f32 1.0, %v328
  %v330 = vrcp.pop %v280
  %v331 = vmul.f32 %v280, %v330
  %v332 = vsub.f32 1.0, %v331
  %v333 = vmul.f32 %v330, %v332
  %v334 = vadd.f32 %v330, %v333
  %vm335 = vweird.f32 %v280
  %vm336 = vweird.f32 %v330
  %vm337 = vmor %vm335, %vm336
  %v338 = vsel %vm337, %v330, %v334
  %v339 = vand.u32 2147483647, %v280
  %vm340 = vcmp.eq.f32.partialorder %v339, 8.507059e+37
  %v341 = vand.u32 %v280, 2147483648
  %v342 = vor.u32 1.1754944e-38, %v341
  %v343 = vsel %vm340, %v342, %v338
  %v344 = vmul.f32 1.0, %v343
  %v345 = vrcp.pop %v281
  %v346 = vmul.f32 %v281, %v345
  %v347 = vsub.f32 1.0, %v346
  %v348 = vmul.f32 %v345, %v347
  %v349 = vadd.f32 %v345, %v348
  %vm350 = vweird.f32 %v281
  %vm351 = vweird.f32 %v345
  %vm352 = vmor %vm350, %vm351
  %v353 = vsel %vm352, %v345, %v349
  %v354 = vand.u32 2147483647, %v281
  %vm355 = vcmp.eq.f32.partialorder %v354, 8.507059e+37
  %v356 = vand.u32 %v281, 2147483648
  %v357 = vor.u32 1.1754944e-38, %v356
  %v358 = vsel %vm355, %v357, %v353
  %v359 = vmul.f32 1.0, %v358
  %v360 = vrcp.pop %v282
  %v361 = vmul.f32 %v282, %v360
  %v362 = vsub.f32 1.0, %v361
  %v363 = vmul.f32 %v360, %v362
  %v364 = vadd.f32 %v360, %v363
  %vm365 = vweird.f32 %v282
  %vm366 = vweird.f32 %v360
  %vm367 = vmor %vm365, %vm366
  %v368 = vsel %vm367, %v360, %v364
  %v369 = vand.u32 2147483647, %v282
  %vm370 = vcmp.eq.f32.partialorder %v369, 8.507059e+37
  %v371 = vand.u32 %v282, 2147483648
  %v372 = vor.u32 1.1754944e-38, %v371
  %v373 = vsel %vm370, %v372, %v368
  %v374 = vmul.f32 1.0, %v373
  %v375 = vrcp.pop %v283
  %v376 = vmul.f32 %v283, %v375
  %v377 = vsub.f32 1.0, %v376
  %v378 = vmul.f32 %v375, %v377
  %v379 = vadd.f32 %v375, %v378
  %vm380 = vweird.f32 %v283
  %vm381 = vweird.f32 %v375
  %vm382 = vmor %vm380, %vm381
  %v383 = vsel %vm382, %v375, %v379
  %v384 = vand.u32 2147483647, %v283
  %vm385 = vcmp.eq.f32.partialorder %v384, 8.507059e+37
  %v386 = vand.u32 %v283, 2147483648
  %v387 = vor.u32 1.1754944e-38, %v386
  %v388 = vsel %vm385, %v387, %v383
  %v389 = vmul.f32 1.0, %v388
  %v390 = vrcp.pop %v284
  %v391 = vmul.f32 %v284, %v390
  %v392 = vsub.f32 1.0, %v391
  %v393 = vmul.f32 %v390, %v392
  %v394 = vadd.f32 %v390, %v393
  %vm395 = vweird.f32 %v284
  %vm396 = vweird.f32 %v390
  %vm397 = vmor %vm395, %vm396
  %v398 = vsel %vm397, %v390, %v394
  %v399 = vand.u32 2147483647, %v284
  %vm400 = vcmp.eq.f32.partialorder %v399, 8.507059e+37
  %v401 = vand.u32 %v284, 2147483648
  %v402 = vor.u32 1.1754944e-38, %v401
  %v403 = vsel %vm400, %v402, %v398
  %v404 = vmul.f32 1.0, %v403
  %406 = vset.pattern.permute.xlu0 0
  %407 = vperm.xlu0 %406, %v299
  %v408 = vpop.permute.xlu0 %407
  %411 = vset.pattern.permute.xlu0 0
  %412 = vperm.xlu0 %411, %v314
  %v413 = vpop.permute.xlu0 %412
  %416 = vset.pattern.permute.xlu0 0
  %417 = vperm.xlu0 %416, %v329
  %v418 = vpop.permute.xlu0 %417
  %421 = vset.pattern.permute.xlu0 0
  %422 = vperm.xlu0 %421, %v344
  %v423 = vpop.permute.xlu0 %422
  %426 = vset.pattern.permute.xlu0 0
  %427 = vperm.xlu0 %426, %v359
  %v428 = vpop.permute.xlu0 %427
  %431 = vset.pattern.permute.xlu0 0
  %432 = vperm.xlu0 %431, %v374
  %v433 = vpop.permute.xlu0 %432
  %436 = vset.pattern.permute.xlu0 0
  %437 = vperm.xlu0 %436, %v389
  %v438 = vpop.permute.xlu0 %437
  %441 = vset.pattern.permute.xlu0 0
  %442 = vperm.xlu0 %441, %v404
  %v443 = vpop.permute.xlu0 %442
  %v445 = vmul.f32 %v26, %v408
  %v446 = vmul.f32 %v27, %v408
  %v447 = vmul.f32 %v28, %v413
  %v448 = vmul.f32 %v29, %v413
  %v449 = vmul.f32 %v30, %v418
  %v450 = vmul.f32 %v31, %v418
  %v451 = vmul.f32 %v32, %v423
  %v452 = vmul.f32 %v33, %v423
  %v453 = vmul.f32 %v34, %v428
  %v454 = vmul.f32 %v35, %v428
  %v455 = vmul.f32 %v36, %v433
  %v456 = vmul.f32 %v37, %v433
  %v457 = vmul.f32 %v38, %v438
  %v458 = vmul.f32 %v39, %v438
  %v459 = vmul.f32 %v40, %v443
  %v460 = vmul.f32 %v41, %v443
  %461 = vst [vmem:[%s3] sm:$0xff] %v445
  %462 = vst [vmem:[%s3 + $0x8] sm:$0xff] %v446
  %463 = vst [vmem:[%s3 + $0x10] sm:$0xff] %v447
  %464 = vst [vmem:[%s3 + $0x18] sm:$0xff] %v448
  %465 = vst [vmem:[%s3 + $0x20] sm:$0xff] %v449
  %466 = vst [vmem:[%s3 + $0x28] sm:$0xff] %v450
  %467 = vst [vmem:[%s3 + $0x30] sm:$0xff] %v451
  %468 = vst [vmem:[%s3 + $0x38] sm:$0xff] %v452
  %469 = vst [vmem:[%s3 + $0x40] sm:$0xff] %v453
  %470 = vst [vmem:[%s3 + $0x48] sm:$0xff] %v454
  %471 = vst [vmem:[%s3 + $0x50] sm:$0xff] %v455
  %472 = vst [vmem:[%s3 + $0x58] sm:$0xff] %v456
  %473 = vst [vmem:[%s3 + $0x60] sm:$0xff] %v457
  %474 = vst [vmem:[%s3 + $0x68] sm:$0xff] %v458
  %475 = vst [vmem:[%s3 + $0x70] sm:$0xff] %v459
  %476 = vst [vmem:[%s3 + $0x78] sm:$0xff] %v460
  %s477 = scalar_lea.vmem %s0, 128
  %v478 = vld [vmem:[%s477] sm:$0xff]
  %v479 = vld [vmem:[%s477 + $0x8] sm:$0xff]
  %v480 = vld [vmem:[%s477 + $0x10] sm:$0xff]
  %v481 = vld [vmem:[%s477 + $0x18] sm:$0xff]
  %v482 = vld [vmem:[%s477 + $0x20] sm:$0xff]
  %v483 = vld [vmem:[%s477 + $0x28] sm:$0xff]
  %v484 = vld [vmem:[%s477 + $0x30] sm:$0xff]
  %v485 = vld [vmem:[%s477 + $0x38] sm:$0xff]
  %v486 = vld [vmem:[%s477 + $0x40] sm:$0xff]
  %v487 = vld [vmem:[%s477 + $0x48] sm:$0xff]
  %v488 = vld [vmem:[%s477 + $0x50] sm:$0xff]
  %v489 = vld [vmem:[%s477 + $0x58] sm:$0xff]
  %v490 = vld [vmem:[%s477 + $0x60] sm:$0xff]
  %v491 = vld [vmem:[%s477 + $0x68] sm:$0xff]
  %v492 = vld [vmem:[%s477 + $0x70] sm:$0xff]
  %v493 = vld [vmem:[%s477 + $0x78] sm:$0xff]
  %v494 = vadd.f32 %v478, %v479
  %495 = vadd.xlane.f32.xlu0 %v494
  %v496 = vpop.xlane.xlu0 %495
  %v497 = vadd.f32 %v480, %v481
  %498 = vadd.xlane.f32.xlu0 %v497
  %v499 = vpop.xlane.xlu0 %498
  %v500 = vadd.f32 %v482, %v483
  %501 = vadd.xlane.f32.xlu0 %v500
  %v502 = vpop.xlane.xlu0 %501
  %v503 = vadd.f32 %v484, %v485
  %504 = vadd.xlane.f32.xlu0 %v503
  %v505 = vpop.xlane.xlu0 %504
  %v506 = vadd.f32 %v486, %v487
  %507 = vadd.xlane.f32.xlu0 %v506
  %v508 = vpop.xlane.xlu0 %507
  %v509 = vadd.f32 %v488, %v489
  %510 = vadd.xlane.f32.xlu0 %v509
  %v511 = vpop.xlane.xlu0 %510
  %v512 = vadd.f32 %v490, %v491
  %513 = vadd.xlane.f32.xlu0 %v512
  %v514 = vpop.xlane.xlu0 %513
  %v515 = vadd.f32 %v492, %v493
  %516 = vadd.xlane.f32.xlu0 %v515
  %v517 = vpop.xlane.xlu0 %516
  %v518 = vmul.f32 %v496, 0.00390625
  %v519 = vmul.f32 %v499, 0.00390625
  %v520 = vmul.f32 %v502, 0.00390625
  %v521 = vmul.f32 %v505, 0.00390625
  %v522 = vmul.f32 %v508, 0.00390625
  %v523 = vmul.f32 %v511, 0.00390625
  %v524 = vmul.f32 %v514, 0.00390625
  %v525 = vmul.f32 %v517, 0.00390625
  %v526 = vmax.f32 %v478, %v479
  %527 = vmax.xlane.f32.xlu0 %v526
  %v528 = vpop.xlane.xlu0 %527
  %v529 = vmax.f32 %v480, %v481
  %530 = vmax.xlane.f32.xlu0 %v529
  %v531 = vpop.xlane.xlu0 %530
  %v532 = vmax.f32 %v482, %v483
  %533 = vmax.xlane.f32.xlu0 %v532
  %v534 = vpop.xlane.xlu0 %533
  %v535 = vmax.f32 %v484, %v485
  %536 = vmax.xlane.f32.xlu0 %v535
  %v537 = vpop.xlane.xlu0 %536
  %v538 = vmax.f32 %v486, %v487
  %539 = vmax.xlane.f32.xlu0 %v538
  %v540 = vpop.xlane.xlu0 %539
  %v541 = vmax.f32 %v488, %v489
  %542 = vmax.xlane.f32.xlu0 %v541
  %v543 = vpop.xlane.xlu0 %542
  %v544 = vmax.f32 %v490, %v491
  %545 = vmax.xlane.f32.xlu0 %v544
  %v546 = vpop.xlane.xlu0 %545
  %v547 = vmax.f32 %v492, %v493
  %548 = vmax.xlane.f32.xlu0 %v547
  %v549 = vpop.xlane.xlu0 %548
  %v550 = vsel %vm98, %v518, %v528
  %v551 = vsel %vm98, %v519, %v531
  %v552 = vsel %vm98, %v520, %v534
  %v553 = vsel %vm98, %v521, %v537
  %v554 = vsel %vm98, %v522, %v540
  %v555 = vsel %vm98, %v523, %v543
  %v556 = vsel %vm98, %v524, %v546
  %v557 = vsel %vm98, %v525, %v549
  %558 = vmatpush.msra.mxu0 0.0
  %559 = vmatpush.msra.mxu0 0.0
  %560 = vmatpush.msra.mxu0 0.0
  %561 = vmatpush.msra.mxu0 0.0
  %562 = vmatpush.msra.mxu0 0.0
  %563 = vmatpush.msra.mxu0 0.0
  %564 = vmatpush.msra.mxu0 0.0
  %565 = vmatpush.msra.mxu0 0.0
  %566 = vmatpush.msra.mxu0 %v557
  %567 = vmatpush.msra.mxu0 %v556
  %568 = vmatpush.msra.mxu0 %v555
  %569 = vmatpush.msra.mxu0 %v554
  %570 = vmatpush.msra.mxu0 %v553
  %571 = vmatpush.msra.mxu0 %v552
  %572 = vmatpush.msra.mxu0 %v551
  %573 = vmatpush.msra.mxu0 %v550
  %574 = vmatmul.f32.gmra.mxu0 %v109
  %v575 = vpop.f32.mrf.mxu0
  %v576 = vadd.f32 0.0, %v575
  %577 = vmatmul.f32.gmra.mxu0 %v112
  %v578 = vpop.f32.mrf.mxu0
  %v579 = vadd.f32 0.0, %v578
  %580 = vdwg.mxu0
  %v581 = vmax.f32 %v576, 0.0
  %v582 = vmax.f32 %v579, 0.0
  %583 = vmatpush.msra.mxu0 0.0
  %584 = vmatpush.msra.mxu0 0.0
  %585 = vmatpush.msra.mxu0 0.0
  %586 = vmatpush.msra.mxu0 0.0
  %587 = vmatpush.msra.mxu0 0.0
  %588 = vmatpush.msra.mxu0 0.0
  %589 = vmatpush.msra.mxu0 0.0
  %590 = vmatpush.msra.mxu0 0.0
  %591 = vmatpush.msra.mxu0 0.0
  %592 = vmatpush.msra.mxu0 0.0
  %593 = vmatpush.msra.mxu0 0.0
  %594 = vmatpush.msra.mxu0 0.0
  %595 = vmatpush.msra.mxu0 0.0
  %596 = vmatpush.msra.mxu0 0.0
  %597 = vmatpush.msra.mxu0 %v582
  %598 = vmatpush.msra.mxu0 %v581
  %599 = vmatmul.f32.gmra.mxu0 %v141
  %v600 = vpop.f32.mrf.mxu0
  %v601 = vadd.f32 0.0, %v600
  %602 = vmatmul.f32.gmra.mxu0 %v144
  %v603 = vpop.f32.mrf.mxu0
  %v604 = vadd.f32 0.0, %v603
  %605 = vmatmul.f32.gmra.mxu0 %v147
  %v606 = vpop.f32.mrf.mxu0
  %v607 = vadd.f32 0.0, %v606
  %608 = vmatmul.f32.gmra.mxu0 %v150
  %v609 = vpop.f32.mrf.mxu0
  %v610 = vadd.f32 0.0, %v609
  %611 = vmatmul.f32.gmra.mxu0 %v153
  %v612 = vpop.f32.mrf.mxu0
  %v613 = vadd.f32 0.0, %v612
  %614 = vmatmul.f32.gmra.mxu0 %v156
  %v615 = vpop.f32.mrf.mxu0
  %v616 = vadd.f32 0.0, %v615
  %617 = vmatmul.f32.gmra.mxu0 %v159
  %v618 = vpop.f32.mrf.mxu0
  %v619 = vadd.f32 0.0, %v618
  %620 = vmatmul.f32.gmra.mxu0 %v162
  %v621 = vpop.f32.mrf.mxu0
  %v622 = vadd.f32 0.0, %v621
  %623 = vdwg.mxu0
  %632 = vrot.lane.b32.xlu0 %v601, 127
  %v633 = vpop.permute.xlu0 %632
  %634 = vrot.lane.b32.xlu0 %v604, 127
  %v635 = vpop.permute.xlu0 %634
  %636 = vrot.lane.b32.xlu0 %v607, 127
  %v637 = vpop.permute.xlu0 %636
  %638 = vrot.lane.b32.xlu0 %v610, 127
  %v639 = vpop.permute.xlu0 %638
  %640 = vrot.lane.b32.xlu0 %v613, 127
  %v641 = vpop.permute.xlu0 %640
  %642 = vrot.lane.b32.xlu0 %v616, 127
  %v643 = vpop.permute.xlu0 %642
  %644 = vrot.lane.b32.xlu0 %v619, 127
  %v645 = vpop.permute.xlu0 %644
  %646 = vrot.lane.b32.xlu0 %v622, 127
  %v647 = vpop.permute.xlu0 %646
  %v656 = vadd.f32 %v601, %v633
  %v657 = vadd.f32 %v604, %v635
  %v658 = vadd.f32 %v607, %v637
  %v659 = vadd.f32 %v610, %v639
  %v660 = vadd.f32 %v613, %v641
  %v661 = vadd.f32 %v616, %v643
  %v662 = vadd.f32 %v619, %v645
  %v663 = vadd.f32 %v622, %v647
  %s664 = scalar_lea.vmem %s4, 64
  %665 = vst.msk [vmem:[%s664] sm:$0xff] %vm98, %v656
  %666 = vst.msk [vmem:[%s664 + $0x8] sm:$0xff] %vm98, %v657
  %667 = vst.msk [vmem:[%s664 + $0x10] sm:$0xff] %vm98, %v658
  %668 = vst.msk [vmem:[%s664 + $0x18] sm:$0xff] %vm98, %v659
  %669 = vst.msk [vmem:[%s664 + $0x20] sm:$0xff] %vm98, %v660
  %670 = vst.msk [vmem:[%s664 + $0x28] sm:$0xff] %vm98, %v661
  %671 = vst.msk [vmem:[%s664 + $0x30] sm:$0xff] %vm98, %v662
  %672 = vst.msk [vmem:[%s664 + $0x38] sm:$0xff] %vm98, %v663
  %v673 = vxor.u32 %v656, 2147483648
  %v674 = vxor.u32 %v657, 2147483648
  %v675 = vxor.u32 %v658, 2147483648
  %v676 = vxor.u32 %v659, 2147483648
  %v677 = vxor.u32 %v660, 2147483648
  %v678 = vxor.u32 %v661, 2147483648
  %v679 = vxor.u32 %v662, 2147483648
  %v680 = vxor.u32 %v663, 2147483648
  %v681 = vmul.f32 %v673, 1.442695
  %v682 = vpow.pop %v681
  %v683 = vmul.f32 %v674, 1.442695
  %v684 = vpow.pop %v683
  %v685 = vmul.f32 %v675, 1.442695
  %v686 = vpow.pop %v685
  %v687 = vmul.f32 %v676, 1.442695
  %v688 = vpow.pop %v687
  %v689 = vmul.f32 %v677, 1.442695
  %v690 = vpow.pop %v689
  %v691 = vmul.f32 %v678, 1.442695
  %v692 = vpow.pop %v691
  %v693 = vmul.f32 %v679, 1.442695
  %v694 = vpow.pop %v693
  %v695 = vmul.f32 %v680, 1.442695
  %v696 = vpow.pop %v695
  %v697 = vadd.f32 %v682, 1.0
  %v698 = vadd.f32 %v684, 1.0
  %v699 = vadd.f32 %v686, 1.0
  %v700 = vadd.f32 %v688, 1.0
  %v701 = vadd.f32 %v690, 1.0
  %v702 = vadd.f32 %v692, 1.0
  %v703 = vadd.f32 %v694, 1.0
  %v704 = vadd.f32 %v696, 1.0
  %v705 = vrcp.pop %v697
  %v706 = vmul.f32 %v697, %v705
  %v707 = vsub.f32 1.0, %v706
  %v708 = vmul.f32 %v705, %v707
  %v709 = vadd.f32 %v705, %v708
  %vm710 = vweird.f32 %v697
  %vm711 = vweird.f32 %v705
  %vm712 = vmor %vm710, %vm711
  %v713 = vsel %vm712, %v705, %v709
  %v714 = vand.u32 2147483647, %v697
  %vm715 = vcmp.eq.f32.partialorder %v714, 8.507059e+37
  %v716 = vand.u32 %v697, 2147483648
  %v717 = vor.u32 1.1754944e-38, %v716
  %v718 = vsel %vm715, %v717, %v713
  %v719 = vmul.f32 1.0, %v718
  %v720 = vrcp.pop %v698
  %v721 = vmul.f32 %v698, %v720
  %v722 = vsub.f32 1.0, %v721
  %v723 = vmul.f32 %v720, %v722
  %v724 = vadd.f32 %v720, %v723
  %vm725 = vweird.f32 %v698
  %vm726 = vweird.f32 %v720
  %vm727 = vmor %vm725, %vm726
  %v728 = vsel %vm727, %v720, %v724
  %v729 = vand.u32 2147483647, %v698
  %vm730 = vcmp.eq.f32.partialorder %v729, 8.507059e+37
  %v731 = vand.u32 %v698, 2147483648
  %v732 = vor.u32 1.1754944e-38, %v731
  %v733 = vsel %vm730, %v732, %v728
  %v734 = vmul.f32 1.0, %v733
  %v735 = vrcp.pop %v699
  %v736 = vmul.f32 %v699, %v735
  %v737 = vsub.f32 1.0, %v736
  %v738 = vmul.f32 %v735, %v737
  %v739 = vadd.f32 %v735, %v738
  %vm740 = vweird.f32 %v699
  %vm741 = vweird.f32 %v735
  %vm742 = vmor %vm740, %vm741
  %v743 = vsel %vm742, %v735, %v739
  %v744 = vand.u32 2147483647, %v699
  %vm745 = vcmp.eq.f32.partialorder %v744, 8.507059e+37
  %v746 = vand.u32 %v699, 2147483648
  %v747 = vor.u32 1.1754944e-38, %v746
  %v748 = vsel %vm745, %v747, %v743
  %v749 = vmul.f32 1.0, %v748
  %v750 = vrcp.pop %v700
  %v751 = vmul.f32 %v700, %v750
  %v752 = vsub.f32 1.0, %v751
  %v753 = vmul.f32 %v750, %v752
  %v754 = vadd.f32 %v750, %v753
  %vm755 = vweird.f32 %v700
  %vm756 = vweird.f32 %v750
  %vm757 = vmor %vm755, %vm756
  %v758 = vsel %vm757, %v750, %v754
  %v759 = vand.u32 2147483647, %v700
  %vm760 = vcmp.eq.f32.partialorder %v759, 8.507059e+37
  %v761 = vand.u32 %v700, 2147483648
  %v762 = vor.u32 1.1754944e-38, %v761
  %v763 = vsel %vm760, %v762, %v758
  %v764 = vmul.f32 1.0, %v763
  %v765 = vrcp.pop %v701
  %v766 = vmul.f32 %v701, %v765
  %v767 = vsub.f32 1.0, %v766
  %v768 = vmul.f32 %v765, %v767
  %v769 = vadd.f32 %v765, %v768
  %vm770 = vweird.f32 %v701
  %vm771 = vweird.f32 %v765
  %vm772 = vmor %vm770, %vm771
  %v773 = vsel %vm772, %v765, %v769
  %v774 = vand.u32 2147483647, %v701
  %vm775 = vcmp.eq.f32.partialorder %v774, 8.507059e+37
  %v776 = vand.u32 %v701, 2147483648
  %v777 = vor.u32 1.1754944e-38, %v776
  %v778 = vsel %vm775, %v777, %v773
  %v779 = vmul.f32 1.0, %v778
  %v780 = vrcp.pop %v702
  %v781 = vmul.f32 %v702, %v780
  %v782 = vsub.f32 1.0, %v781
  %v783 = vmul.f32 %v780, %v782
  %v784 = vadd.f32 %v780, %v783
  %vm785 = vweird.f32 %v702
  %vm786 = vweird.f32 %v780
  %vm787 = vmor %vm785, %vm786
  %v788 = vsel %vm787, %v780, %v784
  %v789 = vand.u32 2147483647, %v702
  %vm790 = vcmp.eq.f32.partialorder %v789, 8.507059e+37
  %v791 = vand.u32 %v702, 2147483648
  %v792 = vor.u32 1.1754944e-38, %v791
  %v793 = vsel %vm790, %v792, %v788
  %v794 = vmul.f32 1.0, %v793
  %v795 = vrcp.pop %v703
  %v796 = vmul.f32 %v703, %v795
  %v797 = vsub.f32 1.0, %v796
  %v798 = vmul.f32 %v795, %v797
  %v799 = vadd.f32 %v795, %v798
  %vm800 = vweird.f32 %v703
  %vm801 = vweird.f32 %v795
  %vm802 = vmor %vm800, %vm801
  %v803 = vsel %vm802, %v795, %v799
  %v804 = vand.u32 2147483647, %v703
  %vm805 = vcmp.eq.f32.partialorder %v804, 8.507059e+37
  %v806 = vand.u32 %v703, 2147483648
  %v807 = vor.u32 1.1754944e-38, %v806
  %v808 = vsel %vm805, %v807, %v803
  %v809 = vmul.f32 1.0, %v808
  %v810 = vrcp.pop %v704
  %v811 = vmul.f32 %v704, %v810
  %v812 = vsub.f32 1.0, %v811
  %v813 = vmul.f32 %v810, %v812
  %v814 = vadd.f32 %v810, %v813
  %vm815 = vweird.f32 %v704
  %vm816 = vweird.f32 %v810
  %vm817 = vmor %vm815, %vm816
  %v818 = vsel %vm817, %v810, %v814
  %v819 = vand.u32 2147483647, %v704
  %vm820 = vcmp.eq.f32.partialorder %v819, 8.507059e+37
  %v821 = vand.u32 %v704, 2147483648
  %v822 = vor.u32 1.1754944e-38, %v821
  %v823 = vsel %vm820, %v822, %v818
  %v824 = vmul.f32 1.0, %v823
  %826 = vset.pattern.permute.xlu0 0
  %827 = vperm.xlu0 %826, %v719
  %v828 = vpop.permute.xlu0 %827
  %831 = vset.pattern.permute.xlu0 0
  %832 = vperm.xlu0 %831, %v734
  %v833 = vpop.permute.xlu0 %832
  %836 = vset.pattern.permute.xlu0 0
  %837 = vperm.xlu0 %836, %v749
  %v838 = vpop.permute.xlu0 %837
  %841 = vset.pattern.permute.xlu0 0
  %842 = vperm.xlu0 %841, %v764
  %v843 = vpop.permute.xlu0 %842
  %846 = vset.pattern.permute.xlu0 0
  %847 = vperm.xlu0 %846, %v779
  %v848 = vpop.permute.xlu0 %847
  %851 = vset.pattern.permute.xlu0 0
  %852 = vperm.xlu0 %851, %v794
  %v853 = vpop.permute.xlu0 %852
  %856 = vset.pattern.permute.xlu0 0
  %857 = vperm.xlu0 %856, %v809
  %v858 = vpop.permute.xlu0 %857
  %861 = vset.pattern.permute.xlu0 0
  %862 = vperm.xlu0 %861, %v824
  %v863 = vpop.permute.xlu0 %862
  %v865 = vmul.f32 %v478, %v828
  %v866 = vmul.f32 %v479, %v828
  %v867 = vmul.f32 %v480, %v833
  %v868 = vmul.f32 %v481, %v833
  %v869 = vmul.f32 %v482, %v838
  %v870 = vmul.f32 %v483, %v838
  %v871 = vmul.f32 %v484, %v843
  %v872 = vmul.f32 %v485, %v843
  %v873 = vmul.f32 %v486, %v848
  %v874 = vmul.f32 %v487, %v848
  %v875 = vmul.f32 %v488, %v853
  %v876 = vmul.f32 %v489, %v853
  %v877 = vmul.f32 %v490, %v858
  %v878 = vmul.f32 %v491, %v858
  %v879 = vmul.f32 %v492, %v863
  %v880 = vmul.f32 %v493, %v863
  %s881 = scalar_lea.vmem %s3, 128
  %882 = vst [vmem:[%s881] sm:$0xff] %v865
  %883 = vst [vmem:[%s881 + $0x8] sm:$0xff] %v866
  %884 = vst [vmem:[%s881 + $0x10] sm:$0xff] %v867
  %885 = vst [vmem:[%s881 + $0x18] sm:$0xff] %v868
  %886 = vst [vmem:[%s881 + $0x20] sm:$0xff] %v869
  %887 = vst [vmem:[%s881 + $0x28] sm:$0xff] %v870
  %888 = vst [vmem:[%s881 + $0x30] sm:$0xff] %v871
  %889 = vst [vmem:[%s881 + $0x38] sm:$0xff] %v872
  %890 = vst [vmem:[%s881 + $0x40] sm:$0xff] %v873
  %891 = vst [vmem:[%s881 + $0x48] sm:$0xff] %v874
  %892 = vst [vmem:[%s881 + $0x50] sm:$0xff] %v875
  %893 = vst [vmem:[%s881 + $0x58] sm:$0xff] %v876
  %894 = vst [vmem:[%s881 + $0x60] sm:$0xff] %v877
  %895 = vst [vmem:[%s881 + $0x68] sm:$0xff] %v878
  %896 = vst [vmem:[%s881 + $0x70] sm:$0xff] %v879
  %897 = vst [vmem:[%s881 + $0x78] sm:$0xff] %v880
  // Predicated region
  $region14: #{channel_attention.1} parent=0 // pred_check
    _
  $region15: #{channel_attention.1} parent=0 // pred_check_branch
    %899 = sbr.rel (0) target = $region17
  $region16: #{channel_attention.1} parent=0 // pred_region
    _
  $region17: #{channel_attention.1} parent=0 // pred_fallthru
    _
  // Predicated region
  $region18: #{channel_attention.1} parent=0 // pred_check
    _
  $region19: #{channel_attention.1} parent=0 // pred_check_branch
    %901 = sbr.rel (0) target = $region21
  $region20: #{channel_attention.1} parent=0 // pred_region
    _
  $region21: #{channel_attention.1} parent=0 // pred_fallthru
    _
  // Predicated region
  $region22: #{channel_attention.1} parent=0 // pred_check
    _
  $region23: #{channel_attention.1} parent=0 // pred_check_branch
    %903 = sbr.rel (0) target = $region25
  $region24: #{channel_attention.1} parent=0 // pred_region
    _
  $region25: #{channel_attention.1} parent=0 // pred_fallthru
    _
  // Predicated region
  $region26: #{channel_attention.1} parent=0 // pred_check
    _
  $region27: #{channel_attention.1} parent=0 // pred_check_branch
    %905 = sbr.rel (0) target = $region29
  $region28: #{channel_attention.1} parent=0 // pred_region
    _
  $region29: #{channel_attention.1} parent=0 // pred_fallthru
    _

</llo_original>
